<compile_context>
chip_gen: v7x
topology: tpu7x:2x2x1
jax: 0.10.0
libtpu: 0.0.40
codegen_flags: <defaults>
</compile_context>

<pallas_src>
import functools

import jax
import jax.numpy as jnp
from jax.experimental import pallas as pl
from jax.experimental.pallas import tpu as pltpu


def _mock_nn_kernel(x_ref, w_ref, y_ref, *, half_frequency: float, k: int, d: int):
    # x_ref: (tb, k*d) packed rows, w_ref: (1, k*d) tiled weight row.
    prod = x_ref[...] * w_ref[...]                               # VPU multiply
    if k == 1:
        proj = jnp.sum(prod, axis=-1, keepdims=True)             # (tb, 1) lane reduce
    else:
        # Segmented lane reduction: each d-wide lane segment is one batch row.
        cols = []
        for j in range(k):
            seg = prod[:, j * d:(j + 1) * d]                     # static lane slice
            cols.append(jnp.sum(seg, axis=-1, keepdims=True))    # (tb, 1)
        proj = jnp.concatenate(cols, axis=-1)                    # (tb, k)
    # 2*sigmoid(f*p) - 1 == tanh((f/2)*p): single EUP instruction.
    y_ref[...] = jnp.tanh(half_frequency * proj)


def mock_neural_network_forward(x: jax.Array,
                                projection_vector: jax.Array,
                                frequency: float = 1.0,
                                *,
                                vmem_budget_bytes: int = 8 * 1024 * 1024,
                                min_pallas_bytes: int = 1 << 16,
                                force_pallas: bool = False) -> jax.Array:
    """Pallas implementation of MockNeuralNetwork.forward.

    x: (B, D) float; projection_vector: (D, 1) float (torch layout).
    frequency must be a Python float (folded into the kernel at trace time).
    Returns (B, 2) float32 == cat((2*sigmoid(f*x@w) - 1, -(...)), dim=1).
    """
    B, D = x.shape
    assert projection_vector.shape == (D, 1)
    half_f = 0.5 * float(frequency)  # contract: Python scalar, not a traced value

    x = x.astype(jnp.float32)
    w_row = projection_vector.reshape(1, D).astype(jnp.float32)

    # Tiny inputs: pallas_call launch/DMA-setup overhead dwarfs ~KiB of work;
    # plain XLA fuses this for free.
    if (B * D * 4 < min_pallas_bytes) and not force_pallas:
        proj = x @ w_row.reshape(D, 1)
        y = jnp.tanh(half_f * proj)
        return jnp.concatenate([y, -y], axis=1)

    # Lane packing factor: fold k batch rows into the 128-wide lane axis when
    # D is a small divisor of 128 (D=32 -> k=4, fully dense vregs/DMAs).
    k = 128 // D if (D < 128 and 128 % D == 0) else 1

    # Pad batch so packed rows are a multiple of 8 (sublane alignment).
    row_align = 8 * k
    Bp = ((B + row_align - 1) // row_align) * row_align
    if Bp != B:
        x = jnp.pad(x, ((0, Bp - B), (0, 0)))
    rows = Bp // k                    # packed row count (multiple of 8)
    Dp = k * D                        # packed lane width

    x_packed = x.reshape(rows, Dp)
    w_packed = jnp.tile(w_row, (1, k))            # (1, k*D)

    # Block sizing by bytes: double-buffered x footprint <= vmem_budget_bytes.
    bytes_per_row = Dp * 4
    tb_budget = max(8, (vmem_budget_bytes // (2 * bytes_per_row)) // 8 * 8)
    # Keep >= 2 grid blocks when possible so v7x's two TensorCores both run.
    tb_half = max(8, ((-(-rows // 2)) + 7) // 8 * 8)
    tb = min(tb_budget, tb_half, rows)
    grid = (pl.cdiv(rows, tb),)

    kernel = functools.partial(_mock_nn_kernel, half_frequency=half_f, k=k, d=D)

    y_packed = pl.pallas_call(
        kernel,
        out_shape=jax.ShapeDtypeStruct((rows, k), jnp.float32),
        grid=grid,
        in_specs=[
            pl.BlockSpec((tb, Dp), lambda i: (i, 0)),
            pl.BlockSpec((1, Dp), lambda i: (0, 0)),
        ],
        out_specs=pl.BlockSpec((tb, k), lambda i: (i, 0)),
        compiler_params=pltpu.CompilerParams(
            dimension_semantics=("parallel",),
            vmem_limit_bytes=32 * 1024 * 1024,
        ),
    )(x_packed, w_packed)

    # Unpack, trim padding, and build cat((y, -y), 1) in the wrapper
    # (output is tiny relative to x; avoids 2/128-lane masked stores in-kernel).
    y = y_packed.reshape(Bp, 1)[:B]
    return jnp.concatenate([y, -y], axis=1)


def _reference(x, projection_vector, frequency):
    proj = x.astype(jnp.float32) @ projection_vector.astype(jnp.float32)
    out = 2.0 * jax.nn.sigmoid(proj * frequency) - 1.0
    return jnp.concatenate([out, -out], axis=1)


if __name__ == "__main__":
    key = jax.random.PRNGKey(0)
    frequency = 1.0

    # Small shapes consistent with the module: batch=8, num_dim=32.
    B, D = 8, 32
    x_small = jax.random.normal(key, (B, D), dtype=jnp.float32)
    w = jnp.ones((D, 1), dtype=jnp.float32)   # matches torch.ones((num_dim, 1))

    out_small = mock_neural_network_forward(x_small, w, frequency,
                                            force_pallas=True)
    out_small = jax.block_until_ready(out_small)
    ref_small = _reference(x_small, w, frequency)
    assert out_small.shape == (B, 2)
    assert jnp.allclose(out_small, ref_small, atol=1e-5, rtol=1e-5)

    # Larger batch to exercise lane packing + byte-sized batch tiling.
    B2 = 4100  # deliberately not a multiple of the packing/tile size
    x_big = jax.random.normal(jax.random.PRNGKey(1), (B2, D), dtype=jnp.float32)
    out_big = jax.block_until_ready(
        mock_neural_network_forward(x_big, w, frequency))
    ref_big = _reference(x_big, w, frequency)
    assert out_big.shape == (B2, 2)
    assert jnp.allclose(out_big, ref_big, atol=1e-5, rtol=1e-5)

    print("KERNEL_OK")
</pallas_src>

<mosaic_0001>
module attributes {stable_mosaic.version = 11 : i64} {
  func.func @_mock_nn_kernel(%arg0: i32, %arg1: memref<8x128xf32, #tpu.memory_space<vmem>>, %arg2: memref<1x128xf32, #tpu.memory_space<vmem>>, %arg3: memref<8x4xf32, #tpu.memory_space<vmem>>) attributes {dimension_semantics = [#tpu.dimension_semantics<parallel>], iteration_bounds = array<i64: 1>, scalar_prefetch = 0 : i64, scratch_operands = 0 : i64, tpu.core_type = #tpu.core_type<tc>, window_params = [{transform_indices = @transform_0, window_bounds = array<i64: 8, 128>}, {pipeline_mode = #tpu.pipeline_mode<synchronous>, transform_indices = @transform_1, window_bounds = array<i64: 1, 128>}, {transform_indices = @transform_2, window_bounds = array<i64: 8, 4>}]} {
    %c0 = arith.constant 0 : index
    %c0_0 = arith.constant 0 : index
    %0 = vector.load %arg1[%c0, %c0_0] : memref<8x128xf32, #tpu.memory_space<vmem>>, vector<8x128xf32>
    %c0_1 = arith.constant 0 : index
    %c0_2 = arith.constant 0 : index
    %1 = vector.load %arg2[%c0_1, %c0_2] : memref<1x128xf32, #tpu.memory_space<vmem>>, vector<1x128xf32>
    %2 = vector.broadcast %1 : vector<1x128xf32> to vector<8x128xf32>
    %3 = arith.mulf %0, %2 : vector<8x128xf32>
    %4 = vector.extract_strided_slice %3 {offsets = [0, 0], sizes = [8, 32], strides = [1, 1]} : vector<8x128xf32> to vector<8x32xf32>
    %cst = arith.constant dense<0.000000e+00> : vector<8xf32>
    %5 = vector.multi_reduction <add>, %4, %cst [1] : vector<8x32xf32> to vector<8xf32>
    %6 = vector.shape_cast %5 : vector<8xf32> to vector<8x1xf32>
    %7 = vector.extract_strided_slice %3 {offsets = [0, 32], sizes = [8, 32], strides = [1, 1]} : vector<8x128xf32> to vector<8x32xf32>
    %cst_3 = arith.constant dense<0.000000e+00> : vector<8xf32>
    %8 = vector.multi_reduction <add>, %7, %cst_3 [1] : vector<8x32xf32> to vector<8xf32>
    %9 = vector.shape_cast %8 : vector<8xf32> to vector<8x1xf32>
    %10 = vector.extract_strided_slice %3 {offsets = [0, 64], sizes = [8, 32], strides = [1, 1]} : vector<8x128xf32> to vector<8x32xf32>
    %cst_4 = arith.constant dense<0.000000e+00> : vector<8xf32>
    %11 = vector.multi_reduction <add>, %10, %cst_4 [1] : vector<8x32xf32> to vector<8xf32>
    %12 = vector.shape_cast %11 : vector<8xf32> to vector<8x1xf32>
    %13 = vector.extract_strided_slice %3 {offsets = [0, 96], sizes = [8, 32], strides = [1, 1]} : vector<8x128xf32> to vector<8x32xf32>
    %cst_5 = arith.constant dense<0.000000e+00> : vector<8xf32>
    %14 = vector.multi_reduction <add>, %13, %cst_5 [1] : vector<8x32xf32> to vector<8xf32>
    %15 = vector.shape_cast %14 : vector<8xf32> to vector<8x1xf32>
    %16 = tpu.concatenate %6, %9, %12, %15 in 1 : vector<8x1xf32>, vector<8x1xf32>, vector<8x1xf32>, vector<8x1xf32> -> vector<8x4xf32>
    %cst_6 = arith.constant 5.000000e-01 : f32
    %17 = vector.broadcast %cst_6 : f32 to vector<8x4xf32>
    %18 = arith.mulf %17, %16 : vector<8x4xf32>
    %19 = math.tanh %18 : vector<8x4xf32>
    %c0_7 = arith.constant 0 : index
    %c0_8 = arith.constant 0 : index
    %20 = vector.load %arg3[%c0_7, %c0_8] : memref<8x4xf32, #tpu.memory_space<vmem>>, vector<8x4xf32>
    tpu.vector_store %arg3[%c0_7, %c0_8], %19 {strides = array<i32>} : memref<8x4xf32, #tpu.memory_space<vmem>>, vector<8x4xf32>,
    return
  }
  func.func @transform_0(%arg0: i32) -> (i32, i32) {
    %c0_i32 = arith.constant 0 : i32
    %c0_i32_0 = arith.constant 0 : i32
    return %arg0, %c0_i32 : i32, i32
  }
  func.func @transform_1(%arg0: i32) -> (i32, i32) {
    %c0_i32 = arith.constant 0 : i32
    %c0_i32_0 = arith.constant 0 : i32
    %c0_i32_1 = arith.constant 0 : i32
    return %c0_i32, %c0_i32_0 : i32, i32
  }
  func.func @transform_2(%arg0: i32) -> (i32, i32) {
    %c0_i32 = arith.constant 0 : i32
    %c0_i32_0 = arith.constant 0 : i32
    return %arg0, %c0_i32 : i32, i32
  }
}

</mosaic_0001>

<llo_original>
// kernel: tpu_custom_call.1
$region0: #{tpu_custom_call.1}
  #allocation0 [shape = 'u32[]', space=smem, size = 0x4, offset = 0x4, fixed_abs, tag = 'smem constant byte address 0x4 - core index']
  #allocation1 [shape = 'u32[144,128]{1,0:T(1,128)}', space=vmem, size = 0x12000, scoped, tag = 'internal scratch']
  %s0 = inlined_call_operand.hbm [shape: f32[8,128], index: 0, kind: input, shape index: {}]
  %s1 = inlined_call_operand.vmem [shape: f32[1,128], index: 1, kind: input, shape index: {}]
  %s2 = inlined_call_operand.vmem [shape: f32[8,4], index: 2, kind: output, shape index: {}]
  %s3 = sld [smem:[#allocation0]]
  $region22: #{tpu_custom_call.1} parent=0
    _
  %s5 = ssub.s32 1, %s3
  %s6 = scalar_select 0, %s5, %s3
  $region1: #{tpu_custom_call.1} parent=0
    #allocation2 [shape = 'u8[4096]{0}', space=vmem, size = 0x1000, scoped, tag = 'input window, operand 0, single buffered']
    #allocation3 [shape = 's32[1]{0}', space=sflag, size = 0x4, scoped, tag = 'scoped memory for tpu_custom_call.1']
    %7 = vsyncpa [#allocation3], 0
    // Predicated region
    $region2: #{tpu_custom_call.1} parent=1 // pred_check
      _
    $region3: #{tpu_custom_call.1} parent=1 // pred_check_branch
      %9 = sbr.rel (0) target = $region5
    $region4: #{tpu_custom_call.1} parent=1 // pred_region
      %s11 = ssub.s32 128, 128
      %12 = vsyncadd [#allocation3], %s11
      %s14 = sshll.u32 [#allocation2], 4
      %s15 = int_to_ptr.vmem [resolvable:$true] %s14
      %17 = dma.hbm_to_vmem [thread:$0]  %s0, 128, %s15, [#allocation3]
    $region5: #{tpu_custom_call.1} parent=1 // pred_fallthru
      _
    // Predicated region
    $region6: #{tpu_custom_call.1} parent=1 // pred_check
      _
    $region7: #{tpu_custom_call.1} parent=1 // pred_check_branch
      %19 = sbr.rel (0) target = $region9
    $region8: #{tpu_custom_call.1} parent=1 // pred_region
      _
    $region9: #{tpu_custom_call.1} parent=1 // pred_fallthru
      _
    // Predicated region
    $region10: #{tpu_custom_call.1} parent=1 // pred_check
      _
    $region11: #{tpu_custom_call.1} parent=1 // pred_check_branch
      %21 = sbr.rel (0) target = $region13
    $region12: #{tpu_custom_call.1} parent=1 // pred_region
      %22 = dma.done [#allocation3], 128
    $region13: #{tpu_custom_call.1} parent=1 // pred_fallthru
      _
    %v23 = vld [vmem:[#allocation2] sm:$0xff]
    %v24 = vld [vmem:[%s1] sm:$0x1]
    %v26 = vlaneseq
    %v27 = vshrl.u32 %v26, 7
    %v28 = vsub.s32 0, %v27
    %v29 = vrot.slane %v24, %v28
    %v31 = vmul.f32 %v23, %v29
    %vm32 = vcmask 261120
    %v33 = vsel %vm32, %v31, 0.0
    %34 = vadd.xlane.f32.xlu0 %v33
    %v35 = vpop.xlane.xlu0 %34
    %37 = vrot.lane.b32.xlu0 %v31, 96
    %v38 = vpop.permute.xlu0 %37
    %v40 = vsel %vm32, %v38, 0.0
    %41 = vadd.xlane.f32.xlu0 %v40
    %v42 = vpop.xlane.xlu0 %41
    %43 = vrot.lane.b32.xlu0 %v31, 64
    %v44 = vpop.permute.xlu0 %43
    %v46 = vsel %vm32, %v44, 0.0
    %47 = vadd.xlane.f32.xlu0 %v46
    %v48 = vpop.xlane.xlu0 %47
    %49 = vrot.lane.b32.xlu0 %v31, 32
    %v50 = vpop.permute.xlu0 %49
    %v52 = vsel %vm32, %v50, 0.0
    %53 = vadd.xlane.f32.xlu0 %v52
    %v54 = vpop.xlane.xlu0 %53
    %vm55 = vcmask 7168
    %v56 = vsel %vm55, %v35, %v42
    %vm57 = vcmask 15360
    %v58 = vsel %vm57, %v56, %v48
    %vm59 = vcmask 23552
    %v60 = vsel %vm59, %v58, %v54
    %v61 = vmul.f32 %v60, 0.5
    %v62 = vtanh.pop %v61
    %vm63 = vcmask 31744
    %64 = vst.msk [vmem:[%s2] sm:$0xff] %vm63, %v62
    // Predicated region
    $region14: #{tpu_custom_call.1} parent=1 // pred_check
      _
    $region15: #{tpu_custom_call.1} parent=1 // pred_check_branch
      %66 = sbr.rel (0) target = $region17
    $region16: #{tpu_custom_call.1} parent=1 // pred_region
      _
    $region17: #{tpu_custom_call.1} parent=1 // pred_fallthru
      _
    // Predicated region
    $region18: #{tpu_custom_call.1} parent=1 // pred_check
      _
    $region19: #{tpu_custom_call.1} parent=1 // pred_check_branch
      %68 = sbr.rel (0) target = $region21
    $region20: #{tpu_custom_call.1} parent=1 // pred_region
      _
    $region21: #{tpu_custom_call.1} parent=1 // pred_fallthru
      _
    %69 = vsyncpa [#allocation3], 1

</llo_original>
